<compile_context>
chip_gen: v7x
topology: tpu7x:2x2x1
jax: 0.10.0
libtpu: 0.0.40
codegen_flags: <defaults>
</compile_context>

<pallas_src>
import functools
import math

import jax
import jax.numpy as jnp
from jax.experimental import pallas as pl
from jax.experimental.pallas import tpu as pltpu


def _elementwise_kernel(*refs, rectify: bool, use_bias: bool):
    if use_bias:
        x_ref, w_ref, b_ref, o_ref = refs
    else:
        x_ref, w_ref, o_ref = refs
        b_ref = None

    # Compute in f32 so bf16/low-precision activations keep f32 param precision.
    y = x_ref[...].astype(jnp.float32) * w_ref[...].astype(jnp.float32)
    if use_bias:
        y = y + b_ref[...].astype(jnp.float32)
    if rectify:
        y = jnp.maximum(y, 0.0)          # relu as max-with-immediate
    o_ref[...] = y.astype(o_ref.dtype)


def _elementwise_pallas_2d(x2, w_row, b_row, *, rectify, use_bias,
                           target_tile_bytes):
    """Run the kernel on a (rows, lane) view (lane is the full last dim)."""
    rows, lane = x2.shape
    dtype = x2.dtype
    itemsize = jnp.dtype(dtype).itemsize
    sub = max(1, 32 // itemsize)         # native sublane multiple: 8 f32 / 16 bf16 / 32 i8

    # ---- Lane (last-dim) tiling: only when even a sub-row-high tile is huge --
    if sub * lane * itemsize > target_tile_bytes and lane > 128:
        tile_l = max(128, (target_tile_bytes // (sub * itemsize)) // 128 * 128)
        tile_l = min(tile_l, lane)
    else:
        tile_l = lane                    # full extent -> lane-dense stores

    # ---- Row tiling ----------------------------------------------------------
    if rows < sub:
        tile_b = rows                    # full-extent block (allowed for any size)
    else:
        tile_b = min(rows, max(sub, target_tile_bytes // (tile_l * itemsize)))
        tile_b = max(sub, (tile_b // sub) * sub)
        # Megacore / pipelining balance: aim for >= 4 grid steps when possible.
        n_lane_blocks = pl.cdiv(lane, tile_l)
        if n_lane_blocks * pl.cdiv(rows, tile_b) < 4 and rows >= 4 * sub:
            tile_b = max(sub, (pl.cdiv(rows, 4) // sub) * sub)

    grid = (pl.cdiv(rows, tile_b), pl.cdiv(lane, tile_l))  # ragged edges masked by Pallas

    kernel = functools.partial(_elementwise_kernel, rectify=rectify,
                               use_bias=use_bias)

    in_specs = [pl.BlockSpec((tile_b, tile_l), lambda i, j: (i, j)),
                pl.BlockSpec((1, tile_l), lambda i, j: (0, j))]
    operands = [x2, w_row]
    if use_bias:
        in_specs.append(pl.BlockSpec((1, tile_l), lambda i, j: (0, j)))
        operands.append(b_row)

    return pl.pallas_call(
        kernel,
        out_shape=jax.ShapeDtypeStruct((rows, lane), dtype),
        grid=grid,
        in_specs=in_specs,
        out_specs=pl.BlockSpec((tile_b, tile_l), lambda i, j: (i, j)),
        compiler_params=pltpu.CompilerParams(
            dimension_semantics=("parallel", "parallel"),
            vmem_limit_bytes=48 << 20),
    )(*operands)


def elementwise_layer(x, weight, bias=None, *, rectify=True, use_bias=True,
                      target_tile_bytes=4 << 20):
    """Pallas implementation of ElementWiseLayer.forward.

    x:      (batch, n_units)
    weight: (n_units,)
    bias:   (n_units,)  (required iff use_bias)
    """
    if use_bias and bias is None:
        raise ValueError("bias is required when use_bias=True")

    batch, n_units = x.shape
    dtype = x.dtype

    # ---- Lane-dense folding: make the kernel's last (lane) dim a x128 multiple
    fold = 1
    if n_units % 128 != 0:
        k = 128 // math.gcd(n_units, 128)  # smallest k with (k*n_units) % 128 == 0
        if batch >= k:
            fold = k                       # fold the divisible prefix; tail below
        # else: batch too small to fold -> fold=1, full-extent lane block

    fold_rows = (batch // fold) * fold     # rows covered by the folded kernel
    tail = batch - fold_rows               # < fold leftover rows (only if fold > 1)

    def param_row(p, f):
        p2 = p if f == 1 else jnp.tile(p, f)
        return p2.reshape(1, n_units * f)

    outputs = []
    if fold_rows > 0:
        x_main = x[:fold_rows] if tail else x
        x2 = x_main.reshape(fold_rows // fold, n_units * fold)
        w_row = param_row(weight, fold)
        b_row = param_row(bias, fold) if use_bias else None
        out_main = _elementwise_pallas_2d(
            x2, w_row, b_row, rectify=rectify, use_bias=use_bias,
            target_tile_bytes=target_tile_bytes)
        outputs.append(out_main.reshape(fold_rows, n_units))

    if tail:
        # TODO(synk): the < fold leftover rows are handled with plain jnp (tiny,
        # < 128 rows); a second masked pallas_call would avoid the concat.
        yt = x[fold_rows:].astype(jnp.float32) * weight.astype(jnp.float32)[None, :]
        if use_bias:
            yt = yt + bias.astype(jnp.float32)[None, :]
        if rectify:
            yt = jnp.maximum(yt, 0.0)
        outputs.append(yt.astype(dtype))

    return outputs[0] if len(outputs) == 1 else jnp.concatenate(outputs, axis=0)


if __name__ == "__main__":
    key = jax.random.PRNGKey(0)
    k_x, k_w, k_b = jax.random.split(key, 3)

    batch, n_units = 4, 32

    # Deterministic parameter init mirroring the PyTorch module:
    #   weight = rand(n_units) * 2   (uniform [0, 2))
    #   bias   = randn(n_units) / 2
    weight = jax.random.uniform(k_w, (n_units,), dtype=jnp.float32) * 2.0
    bias = jax.random.normal(k_b, (n_units,), dtype=jnp.float32) / 2.0
    x = jax.random.normal(k_x, (batch, n_units), dtype=jnp.float32)

    # Main path: weight * x + bias, relu.
    out = elementwise_layer(x, weight, bias, rectify=True, use_bias=True)
    out = jax.block_until_ready(out)
    ref = jnp.maximum(weight[None, :] * x + bias[None, :], 0.0)
    assert out.shape == ref.shape
    assert jnp.allclose(out, ref, atol=1e-6, rtol=1e-6), "mismatch vs reference (bias+relu)"

    # No-bias / no-rectify path (exercises the conditional operand list).
    out2 = elementwise_layer(x, weight, rectify=False, use_bias=False)
    out2 = jax.block_until_ready(out2)
    ref2 = weight[None, :] * x
    assert jnp.allclose(out2, ref2, atol=1e-6, rtol=1e-6), "mismatch vs reference (no bias)"

    print("KERNEL_OK")
</pallas_src>

<mosaic_0001>
module attributes {stable_mosaic.version = 11 : i64} {
  func.func @_elementwise_kernel(%arg0: i32, %arg1: i32, %arg2: memref<1x128xf32, #tpu.memory_space<vmem>>, %arg3: memref<1x128xf32, #tpu.memory_space<vmem>>, %arg4: memref<1x128xf32, #tpu.memory_space<vmem>>, %arg5: memref<1x128xf32, #tpu.memory_space<vmem>>) attributes {dimension_semantics = [#tpu.dimension_semantics<parallel>, #tpu.dimension_semantics<parallel>], iteration_bounds = array<i64: 1, 1>, scalar_prefetch = 0 : i64, scratch_operands = 0 : i64, tpu.core_type = #tpu.core_type<tc>, window_params = [{transform_indices = @transform_0, window_bounds = array<i64: 1, 128>}, {transform_indices = @transform_1, window_bounds = array<i64: 1, 128>}, {transform_indices = @transform_2, window_bounds = array<i64: 1, 128>}, {transform_indices = @transform_3, window_bounds = array<i64: 1, 128>}]} {
    %c0 = arith.constant 0 : index
    %c0_0 = arith.constant 0 : index
    %0 = vector.load %arg2[%c0, %c0_0] : memref<1x128xf32, #tpu.memory_space<vmem>>, vector<1x128xf32>
    %c0_1 = arith.constant 0 : index
    %c0_2 = arith.constant 0 : index
    %1 = vector.load %arg3[%c0_1, %c0_2] : memref<1x128xf32, #tpu.memory_space<vmem>>, vector<1x128xf32>
    %2 = arith.mulf %0, %1 : vector<1x128xf32>
    %c0_3 = arith.constant 0 : index
    %c0_4 = arith.constant 0 : index
    %3 = vector.load %arg4[%c0_3, %c0_4] : memref<1x128xf32, #tpu.memory_space<vmem>>, vector<1x128xf32>
    %4 = arith.addf %2, %3 : vector<1x128xf32>
    %cst = arith.constant 0.000000e+00 : f32
    %5 = vector.broadcast %cst : f32 to vector<1x128xf32>
    %6 = arith.maximumf %4, %5 : vector<1x128xf32>
    %c0_5 = arith.constant 0 : index
    %c0_6 = arith.constant 0 : index
    %7 = vector.load %arg5[%c0_5, %c0_6] : memref<1x128xf32, #tpu.memory_space<vmem>>, vector<1x128xf32>
    tpu.vector_store %arg5[%c0_5, %c0_6], %6 {strides = array<i32>} : memref<1x128xf32, #tpu.memory_space<vmem>>, vector<1x128xf32>,
    return
  }
  func.func @transform_0(%arg0: i32, %arg1: i32) -> (i32, i32) {
    %c0_i32 = arith.constant 0 : i32
    return %arg0, %arg1 : i32, i32
  }
  func.func @transform_1(%arg0: i32, %arg1: i32) -> (i32, i32) {
    %c0_i32 = arith.constant 0 : i32
    %c0_i32_0 = arith.constant 0 : i32
    return %c0_i32, %arg1 : i32, i32
  }
  func.func @transform_2(%arg0: i32, %arg1: i32) -> (i32, i32) {
    %c0_i32 = arith.constant 0 : i32
    %c0_i32_0 = arith.constant 0 : i32
    return %c0_i32, %arg1 : i32, i32
  }
  func.func @transform_3(%arg0: i32, %arg1: i32) -> (i32, i32) {
    %c0_i32 = arith.constant 0 : i32
    return %arg0, %arg1 : i32, i32
  }
}

</mosaic_0001>

<llo_original>
// kernel: tpu_custom_call.1
$region0: #{tpu_custom_call.1}
  #allocation0 [shape = 'u32[]', space=smem, size = 0x4, offset = 0x4, fixed_abs, tag = 'smem constant byte address 0x4 - core index']
  #allocation1 [shape = 'u32[144,128]{1,0:T(1,128)}', space=vmem, size = 0x12000, scoped, tag = 'internal scratch']
  %s0 = inlined_call_operand.hbm [shape: f32[1,128], index: 0, kind: input, shape index: {}]
  %s1 = inlined_call_operand.vmem [shape: f32[1,128], index: 1, kind: input, shape index: {}]
  %s2 = inlined_call_operand.vmem [shape: f32[1,128], index: 2, kind: input, shape index: {}]
  %s3 = inlined_call_operand.hbm [shape: f32[1,128], index: 3, kind: output, shape index: {}]
  %s4 = sld [smem:[#allocation0]]
  $region26: #{tpu_custom_call.1} parent=0
    _
  %s6 = ssub.s32 1, %s4
  %s7 = scalar_select 0, %s6, %s4
  $region1: #{tpu_custom_call.1} parent=0
    #allocation2 [shape = 'u8[512]{0}', space=vmem, size = 0x400, scoped, tag = 'input window, operand 0, single buffered']
    #allocation3 [shape = 's32[1]{0}', space=sflag, size = 0x4, scoped, tag = 'scoped memory for tpu_custom_call.1']
    #allocation4 [shape = 's32[1]{0}', space=sflag, size = 0x4, scoped, tag = 'scoped memory for tpu_custom_call.1']
    #allocation5 [shape = 'u8[512]{0}', space=vmem, size = 0x400, scoped, tag = 'output window, operand 0, single buffered']
    %8 = vsyncpa [#allocation3], 0
    %9 = vsyncpa [#allocation4], 0
    // Predicated region
    $region2: #{tpu_custom_call.1} parent=1 // pred_check
      _
    $region3: #{tpu_custom_call.1} parent=1 // pred_check_branch
      %11 = sbr.rel (0) target = $region5
    $region4: #{tpu_custom_call.1} parent=1 // pred_region
      %s13 = ssub.s32 16, 16
      %14 = vsyncadd [#allocation3], %s13
      %s16 = sshll.u32 [#allocation2], 4
      %s17 = int_to_ptr.vmem [resolvable:$true] %s16
      %19 = dma.hbm_to_vmem [thread:$0]  %s0, 16, %s17, [#allocation3]
    $region5: #{tpu_custom_call.1} parent=1 // pred_fallthru
      _
    // Predicated region
    $region6: #{tpu_custom_call.1} parent=1 // pred_check
      _
    $region7: #{tpu_custom_call.1} parent=1 // pred_check_branch
      %21 = sbr.rel (0) target = $region9
    $region8: #{tpu_custom_call.1} parent=1 // pred_region
      _
    $region9: #{tpu_custom_call.1} parent=1 // pred_fallthru
      _
    // Predicated region
    $region10: #{tpu_custom_call.1} parent=1 // pred_check
      _
    $region11: #{tpu_custom_call.1} parent=1 // pred_check_branch
      %23 = sbr.rel (0) target = $region13
    $region12: #{tpu_custom_call.1} parent=1 // pred_region
      _
    $region13: #{tpu_custom_call.1} parent=1 // pred_fallthru
      _
    // Predicated region
    $region14: #{tpu_custom_call.1} parent=1 // pred_check
      _
    $region15: #{tpu_custom_call.1} parent=1 // pred_check_branch
      %25 = sbr.rel (0) target = $region17
    $region16: #{tpu_custom_call.1} parent=1 // pred_region
      %26 = dma.done [#allocation3], 16
    $region17: #{tpu_custom_call.1} parent=1 // pred_fallthru
      _
    %v27 = vld [vmem:[#allocation2] sm:$0x1]
    %v28 = vld [vmem:[%s1] sm:$0x1]
    %v29 = vmul.f32 %v27, %v28
    %v30 = vld [vmem:[%s2] sm:$0x1]
    %v31 = vadd.f32 %v29, %v30
    %v32 = vmax.f32 %v31, 0.0
    %33 = vst [vmem:[#allocation5] sm:$0x1] %v32
    // Predicated region
    $region18: #{tpu_custom_call.1} parent=1 // pred_check
      _
    $region19: #{tpu_custom_call.1} parent=1 // pred_check_branch
      %35 = sbr.rel (0) target = $region21
    $region20: #{tpu_custom_call.1} parent=1 // pred_region
      %s37 = ssub.s32 16, 16
      %38 = vsyncadd [#allocation4], %s37
      %s40 = sshll.u32 [#allocation5], 4
      %s41 = int_to_ptr.vmem [resolvable:$true] %s40
      %43 = dma.vmem_to_hbm [thread:$0]  %s41, 16, %s3, [#allocation4]
    $region21: #{tpu_custom_call.1} parent=1 // pred_fallthru
      _
    // Predicated region
    $region22: #{tpu_custom_call.1} parent=1 // pred_check
      _
    $region23: #{tpu_custom_call.1} parent=1 // pred_check_branch
      %45 = sbr.rel (0) target = $region25
    $region24: #{tpu_custom_call.1} parent=1 // pred_region
      %46 = dma.done [#allocation4], 16
    $region25: #{tpu_custom_call.1} parent=1 // pred_fallthru
      _
    %47 = vsyncpa [#allocation3], 1
    %48 = vsyncpa [#allocation4], 1

</llo_original>
